<compile_context>
chip_gen: v5e
topology: v5e:2x2
jax: 0.10.0
libtpu: 0.0.40
codegen_flags: <defaults>
</compile_context>

<pallas_src>
import functools

import jax
import jax.numpy as jnp
from jax.experimental import pallas as pl
from jax.experimental.pallas import tpu as pltpu

ALPHA = 0.3
BETA = 0.7      # unused in the forward pass (kept for parity with __init__)
GAMMA = 0.75    # implemented as sqrt(q * sqrt(q)) == q ** 0.75


def _focal_kernel(x_ref, t_ref, o_ref, *, hw, rows_per_tile, needs_mask):
    # x_ref: (1, C, st, 128)  logits for one sample / one spatial row-tile
    # t_ref: (1, 1, st, 128)  targets for the same tile (broadcast over C)
    # o_ref: (1, 1, 1, 128)   lane-dense per-tile partial sums
    x = x_ref[0].astype(jnp.float32)          # (C, st, 128)
    t = t_ref[0].astype(jnp.float32)          # (1, st, 128) -> broadcasts over C

    p = jax.nn.sigmoid(x)                     # (C, st, 128)
    pos = t > 0.0                             # (1, st, 128)

    # Single-branch reformulation of
    #   -A * pos_sub**G * log(clip(p)) - (1-A) * neg_sub**G * log(clip(1-p))
    # (exactly one term is nonzero per element), halving EUP work.
    q = jnp.where(pos, t - p, p)              # (C, st, 128)
    log_arg = jnp.where(pos, p, 1.0 - p)      # (C, st, 128)
    coef = jnp.where(pos, ALPHA, 1.0 - ALPHA)  # (1, st, 128)

    q_pow = jnp.sqrt(q * jnp.sqrt(q))         # q ** 0.75 without exp/log pair
    per_entry = -coef * q_pow * jnp.log(jnp.clip(log_arg, 1e-8, 1.0))

    if needs_mask:
        # Zero out spatial positions past H*W (tail of the 128-lane padding).
        s = pl.program_id(1)
        row = jax.lax.broadcasted_iota(jnp.int32, (rows_per_tile, 128), 0)
        lane = jax.lax.broadcasted_iota(jnp.int32, (rows_per_tile, 128), 1)
        flat = (s * rows_per_tile + row) * 128 + lane
        per_entry = jnp.where((flat < hw)[None, :, :], per_entry, 0.0)

    partial = jnp.sum(per_entry, axis=0)                   # (st, 128)  VPU adds over C
    partial = jnp.sum(partial, axis=0, keepdims=True)      # (1, 128)   sublane reduce
    o_ref[0, 0] = partial


def _pick_rows_per_tile(num_rows, c, itemsize, budget_bytes=8 << 20):
    """Rows (of 128 lanes) per block so the logits block stays under budget.

    Returns either the full extent (always legal) or a multiple of 8
    (satisfies the (8, 128) block-shape constraint).
    """
    max_rows = max(8, budget_bytes // (itemsize * 128 * max(c, 1)))
    if num_rows <= max_rows:
        return num_rows
    st = (max_rows // 8) * 8
    # Prefer a nearby multiple of 8 that divides num_rows (no masked tail).
    for cand in range(st, 7, -8):
        if num_rows % cand == 0:
            return cand
        if st - cand >= 256:
            break
    return st


def multi_focal_loss(inputs, targets):
    """inputs: (N, C, H, W) logits; targets: (N, H, W). Returns scalar f32 loss."""
    N, C, H, W = inputs.shape
    HW = H * W

    # Free, contiguous reshapes — no HBM transpose.
    x = inputs.reshape(N, C, HW)
    t = targets.reshape(N, 1, HW)

    num_rows = pl.cdiv(HW, 128)               # 128-lane rows of the spatial dim
    st = _pick_rows_per_tile(num_rows, C, x.dtype.itemsize)

    # Megacore balance: avoid a 1-step grid when there is room to split.
    if N * pl.cdiv(num_rows, st) < 2 and num_rows >= 16:
        st = max(8, ((pl.cdiv(num_rows, 2) + 7) // 8) * 8)

    S = pl.cdiv(num_rows, st)
    rows_padded = S * st
    hw_padded = rows_padded * 128
    needs_mask = hw_padded != HW

    if needs_mask:
        # One HBM copy only for the rare non-128-aligned / non-divisible case;
        # the padded tail is masked out inside the kernel.
        x = jnp.pad(x, ((0, 0), (0, 0), (0, hw_padded - HW)))
        t = jnp.pad(t, ((0, 0), (0, 0), (0, hw_padded - HW)))

    x = x.reshape(N, C, rows_padded, 128)
    t = t.reshape(N, 1, rows_padded, 128)

    kernel = functools.partial(
        _focal_kernel, hw=HW, rows_per_tile=st, needs_mask=needs_mask)

    partials = pl.pallas_call(
        kernel,
        out_shape=jax.ShapeDtypeStruct((N, S, 1, 128), jnp.float32),
        grid=(N, S),
        in_specs=[
            pl.BlockSpec((1, C, st, 128), lambda n, s: (n, 0, s, 0)),
            pl.BlockSpec((1, 1, st, 128), lambda n, s: (n, 0, s, 0)),
        ],
        out_specs=pl.BlockSpec((1, 1, 1, 128), lambda n, s: (n, s, 0, 0)),
        compiler_params=pltpu.CompilerParams(
            dimension_semantics=("parallel", "parallel"),
            vmem_limit_bytes=48 << 20),
    )(x, t)

    return jnp.sum(partials) / jnp.float32(C)


def _reference(inputs, targets):
    """Pure-JAX reference that mirrors the PyTorch forward literally."""
    C = inputs.shape[1]
    t = targets.astype(jnp.float32)
    total = jnp.float32(0.0)
    for i in range(C):
        p = jax.nn.sigmoid(inputs[:, i, :, :].astype(jnp.float32))
        zeros = jnp.zeros_like(p)
        pos = jnp.where(t > zeros, t - p, zeros)
        neg = jnp.where(t > zeros, zeros, p)
        pe = (-ALPHA * jnp.power(pos, GAMMA) * jnp.log(jnp.clip(p, 1e-8, 1.0))
              - (1 - ALPHA) * jnp.power(neg, GAMMA)
              * jnp.log(jnp.clip(1.0 - p, 1e-8, 1.0)))
        total = total + jnp.sum(pe)
    return total / C


if __name__ == "__main__":
    key = jax.random.PRNGKey(0)
    k1, k2 = jax.random.split(key)
    N, C, H, W = 2, 4, 16, 16
    inputs = jax.random.normal(k1, (N, C, H, W), dtype=jnp.float32)
    # binary targets {0., 1.} — the typical use of this loss
    targets = (jax.random.uniform(k2, (N, H, W)) > 0.5).astype(jnp.float32)

    loss = multi_focal_loss(inputs, targets)
    jax.block_until_ready(loss)

    ref = _reference(inputs, targets)
    assert jnp.allclose(loss, ref, rtol=1e-5, atol=1e-5), (loss, ref)
    print("KERNEL_OK")
</pallas_src>

<mosaic_0001>
module attributes {stable_mosaic.version = 11 : i64} {
  func.func @_focal_kernel(%arg0: i32, %arg1: i32, %arg2: memref<1x4x2x128xf32, #tpu.memory_space<vmem>>, %arg3: memref<1x1x2x128xf32, #tpu.memory_space<vmem>>, %arg4: memref<1x1x1x128xf32, #tpu.memory_space<vmem>>) attributes {dimension_semantics = [#tpu.dimension_semantics<parallel>, #tpu.dimension_semantics<parallel>], iteration_bounds = array<i64: 2, 1>, scalar_prefetch = 0 : i64, scratch_operands = 0 : i64, tpu.core_type = #tpu.core_type<tc>, window_params = [{transform_indices = @transform_0, window_bounds = array<i64: 1, 4, 2, 128>}, {transform_indices = @transform_1, window_bounds = array<i64: 1, 1, 2, 128>}, {transform_indices = @transform_2, window_bounds = array<i64: 1, 1, 1, 128>}]} {
    %c0 = arith.constant 0 : index
    %c0_0 = arith.constant 0 : index
    %c0_1 = arith.constant 0 : index
    %c0_2 = arith.constant 0 : index
    %0 = vector.load %arg2[%c0, %c0_0, %c0_1, %c0_2] : memref<1x4x2x128xf32, #tpu.memory_space<vmem>>, vector<1x4x2x128xf32>
    %1 = vector.shape_cast %0 : vector<1x4x2x128xf32> to vector<4x2x128xf32>
    %c0_3 = arith.constant 0 : index
    %c0_4 = arith.constant 0 : index
    %c0_5 = arith.constant 0 : index
    %c0_6 = arith.constant 0 : index
    %2 = vector.load %arg3[%c0_3, %c0_4, %c0_5, %c0_6] : memref<1x1x2x128xf32, #tpu.memory_space<vmem>>, vector<1x1x2x128xf32>
    %3 = vector.shape_cast %2 : vector<1x1x2x128xf32> to vector<1x2x128xf32>
    %4 = arith.negf %1 : vector<4x2x128xf32>
    %5 = math.exp %4 : vector<4x2x128xf32>
    %cst = arith.constant 1.000000e+00 : f32
    %6 = vector.broadcast %cst : f32 to vector<4x2x128xf32>
    %7 = arith.addf %6, %5 : vector<4x2x128xf32>
    %8 = arith.divf %6, %7 : vector<4x2x128xf32>
    %cst_7 = arith.constant 0.000000e+00 : f32
    %9 = vector.broadcast %cst_7 : f32 to vector<1x2x128xf32>
    %10 = arith.cmpf ogt, %3, %9 : vector<1x2x128xf32>
    %11 = vector.broadcast %3 : vector<1x2x128xf32> to vector<4x2x128xf32>
    %12 = arith.subf %11, %8 : vector<4x2x128xf32>
    %13 = vector.shape_cast %10 : vector<1x2x128xi1> to vector<1x2x128xi1>
    %14 = vector.broadcast %13 : vector<1x2x128xi1> to vector<4x2x128xi1>
    %15 = arith.select %14, %12, %8 : vector<4x2x128xi1>, vector<4x2x128xf32>
    %cst_8 = arith.constant 1.000000e+00 : f32
    %16 = vector.broadcast %cst_8 : f32 to vector<4x2x128xf32>
    %17 = arith.subf %16, %8 : vector<4x2x128xf32>
    %18 = vector.shape_cast %10 : vector<1x2x128xi1> to vector<1x2x128xi1>
    %19 = vector.broadcast %18 : vector<1x2x128xi1> to vector<4x2x128xi1>
    %20 = arith.select %19, %8, %17 : vector<4x2x128xi1>, vector<4x2x128xf32>
    %cst_9 = arith.constant 3.000000e-01 : f32
    %cst_10 = arith.constant 0.699999988 : f32
    %21 = vector.broadcast %cst_9 : f32 to vector<1x2x128xf32>
    %22 = vector.broadcast %cst_10 : f32 to vector<1x2x128xf32>
    %23 = arith.select %10, %21, %22 : vector<1x2x128xi1>, vector<1x2x128xf32>
    %24 = math.sqrt %15 : vector<4x2x128xf32>
    %25 = arith.mulf %15, %24 : vector<4x2x128xf32>
    %26 = math.sqrt %25 : vector<4x2x128xf32>
    %cst_11 = arith.constant 0.000000e+00 : f32
    %27 = vector.broadcast %cst_11 : f32 to vector<1x2x128xf32>
    %28 = arith.subf %27, %23 : vector<1x2x128xf32>
    %29 = vector.broadcast %28 : vector<1x2x128xf32> to vector<4x2x128xf32>
    %30 = arith.mulf %29, %26 : vector<4x2x128xf32>
    %cst_12 = arith.constant 9.99999993E-9 : f32
    %cst_13 = arith.constant 1.000000e+00 : f32
    %31 = vector.broadcast %cst_12 : f32 to vector<4x2x128xf32>
    %32 = arith.maximumf %31, %20 : vector<4x2x128xf32>
    %33 = vector.broadcast %cst_13 : f32 to vector<4x2x128xf32>
    %34 = arith.minimumf %33, %32 : vector<4x2x128xf32>
    %35 = math.log %34 : vector<4x2x128xf32>
    %36 = arith.mulf %30, %35 : vector<4x2x128xf32>
    %cst_14 = arith.constant dense<0.000000e+00> : vector<2x128xf32>
    %37 = vector.multi_reduction <add>, %36, %cst_14 [0] : vector<4x2x128xf32> to vector<2x128xf32>
    %cst_15 = arith.constant dense<0.000000e+00> : vector<128xf32>
    %38 = vector.multi_reduction <add>, %37, %cst_15 [0] : vector<2x128xf32> to vector<128xf32>
    %39 = vector.shape_cast %38 : vector<128xf32> to vector<1x128xf32>
    %c0_16 = arith.constant 0 : index
    %c0_17 = arith.constant 0 : index
    %c0_18 = arith.constant 0 : index
    %c0_19 = arith.constant 0 : index
    %40 = vector.load %arg4[%c0_16, %c0_17, %c0_18, %c0_19] : memref<1x1x1x128xf32, #tpu.memory_space<vmem>>, vector<1x1x1x128xf32>
    %41 = vector.shape_cast %40 : vector<1x1x1x128xf32> to vector<1x128xf32>
    %42 = vector.shape_cast %39 : vector<1x128xf32> to vector<1x1x1x128xf32>
    tpu.vector_store %arg4[%c0_16, %c0_17, %c0_18, %c0_19], %42 {strides = array<i32>} : memref<1x1x1x128xf32, #tpu.memory_space<vmem>>, vector<1x1x1x128xf32>,
    return
  }
  func.func @transform_0(%arg0: i32, %arg1: i32) -> (i32, i32, i32, i32) {
    %c0_i32 = arith.constant 0 : i32
    %c0_i32_0 = arith.constant 0 : i32
    %c0_i32_1 = arith.constant 0 : i32
    return %arg0, %c0_i32, %arg1, %c0_i32_0 : i32, i32, i32, i32
  }
  func.func @transform_1(%arg0: i32, %arg1: i32) -> (i32, i32, i32, i32) {
    %c0_i32 = arith.constant 0 : i32
    %c0_i32_0 = arith.constant 0 : i32
    %c0_i32_1 = arith.constant 0 : i32
    return %arg0, %c0_i32, %arg1, %c0_i32_0 : i32, i32, i32, i32
  }
  func.func @transform_2(%arg0: i32, %arg1: i32) -> (i32, i32, i32, i32) {
    %c0_i32 = arith.constant 0 : i32
    %c0_i32_0 = arith.constant 0 : i32
    %c0_i32_1 = arith.constant 0 : i32
    return %arg0, %arg1, %c0_i32, %c0_i32_0 : i32, i32, i32, i32
  }
}

</mosaic_0001>

<llo_original>
// kernel: tpu_custom_call.1
$region0: #{tpu_custom_call.1}
  #allocation0 [shape = 'u32[]', space=smem, size = 0x4, offset = 0x4, fixed_abs, tag = 'smem constant byte address 0x4 - core index']
  #allocation1 [shape = 'u32[72,128]{1,0:T(1,128)}', space=vmem, size = 0x9000, scoped, tag = 'internal scratch']
  %s0 = inlined_call_operand.hbm [shape: f32[2,4,2,128], index: 0, kind: input, shape index: {}]
  %s1 = inlined_call_operand.hbm [shape: f32[2,1,2,128], index: 1, kind: input, shape index: {}]
  %s2 = inlined_call_operand.hbm [shape: f32[2,1,1,128], index: 2, kind: output, shape index: {}]
  %s3 = sld [smem:[#allocation0]]
  $region49: #{tpu_custom_call.1} parent=0
    _
  %s5 = ssub.s32 1, %s3
  %s6 = scalar_select 0, %s5, %s3
  $region1: #{tpu_custom_call.1} parent=0
    #allocation2 [shape = 'u8[8192]{0}', space=vmem, size = 0x2000, scoped, tag = 'input window, operand 0']
    #allocation3 [shape = 's32[2]{0}', space=sflag, size = 0x8, scoped, tag = 'scoped memory for tpu_custom_call.1']
    #allocation4 [shape = 's32[2]{0}', space=sflag, size = 0x8, scoped, tag = 'scoped memory for tpu_custom_call.1']
    #allocation5 [shape = 'u8[2048]{0}', space=vmem, size = 0x800, scoped, tag = 'input window, operand 1']
    #allocation6 [shape = 's32[2]{0}', space=sflag, size = 0x8, scoped, tag = 'scoped memory for tpu_custom_call.1']
    #allocation7 [shape = 'u8[1024]{0}', space=vmem, size = 0x400, scoped, tag = 'output window, operand 0']
    %7 = vsyncpa [#allocation3], 0
    %s8 = scalar_lea.sflag [#allocation3], 1
    %9 = vsyncpa %s8, 0
    %10 = vsyncpa [#allocation6], 0
    %s11 = scalar_lea.sflag [#allocation6], 1
    %12 = vsyncpa %s11, 0
    %13 = vsyncpa [#allocation4], 0
    %s14 = scalar_lea.sflag [#allocation4], 1
    %15 = vsyncpa %s14, 0
    loop: start=0, step=1, limit=4
    $region2: #{tpu_custom_call.1} parent=1 // loop_pre_header
      _
    $region3: #{tpu_custom_call.1} parent=1 // loop_header
      %s17 = sphi 0, %s21
      %p18 = scmp.ge.s32.totalorder %s17, 4
      %s24 = sphi 0, %s36
      %s25 = sphi 0, %s32
      %s26 = sphi 0, %s24
      %s27 = sphi 0, %s25
      %s28 = sphi 0, %s26
      %s29 = sphi 0, %s27
      %s41 = sphi 0, %s43
      %s44 = sphi 0, %s41
      %s45 = sphi 0, %s44
      %s61 = sphi 0, %s45
      %s69 = sphi 0, %s71
      %s72 = sphi 0, %s69
      %s73 = sphi 0, %s72
      %s89 = sphi 0, %s73
      %s97 = sphi 0, %s99
      %s100 = sphi 0, %s97
      %s101 = sphi 0, %s100
      %s117 = sphi 0, %s101
    $region4: #{tpu_custom_call.1} parent=1 // loop_header_branch
      %20 = sbr.rel (%p18) target = $region8
    $region5: #{tpu_custom_call.1} parent=1 // loop_body
      %s22 = ssub.s32 %s17, 1
      %s23 = ssub.s32 %s17, 2
      %s30 = sadd.s32 1, %s25
      %p31 = scmp.ge.s32.totalorder %s30, 1
      %s32 = scalar_select %p31, 0, %s30
      %s33 = sadd.s32 1, %s24
      %s34 = scalar_select %p31, %s33, %s24
      %p35 = scmp.ge.s32.totalorder %s34, 2
      %s36 = scalar_select %p35, 0, %s34
      %s37 = ssub.s32 %s24, %s36
      %s38 = ssub.s32 %s25, %s32
      %s39 = sor.u32 %s37, %s38
      %p40 = scmp.eq.s32.totalorder %s39, 0
      %s42 = sadd.s32 %s41, 1
      %s43 = scalar_select %p40, %s41, %s42
      %p46 = pneg %p40
      %p47 = scmp.eq.s32.totalorder %s17, 1
      %p48 = por %p46, %p47
      %p49 = scmp.ne.s32.totalorder %s41, %s44
      %p50 = scmp.eq.s32.totalorder %s17, 0
      %p51 = por %p49, %p50
      %p52 = scmp.ne.s32.totalorder %s41, %s44
      %p53 = scmp.eq.s32.totalorder %s22, 1
      %p54 = por %p52, %p53
      %p55 = scmp.ne.s32.totalorder %s44, %s45
      %p56 = scmp.eq.s32.totalorder %s22, 0
      %p57 = por %p55, %p56
      %p58 = scmp.ne.s32.totalorder %s44, %s45
      %p59 = scmp.eq.s32.totalorder %s23, 1
      %p60 = por %p58, %p59
      %p62 = scmp.ne.s32.totalorder %s45, %s61
      %p63 = scmp.eq.s32.totalorder %s23, 0
      %p64 = por %p62, %p63
      %s65 = ssub.s32 %s24, %s36
      %s66 = ssub.s32 %s25, %s32
      %s67 = sor.u32 %s65, %s66
      %p68 = scmp.eq.s32.totalorder %s67, 0
      %s70 = sadd.s32 %s69, 1
      %s71 = scalar_select %p68, %s69, %s70
      %p74 = pneg %p68
      %p75 = scmp.eq.s32.totalorder %s17, 1
      %p76 = por %p74, %p75
      %p77 = scmp.ne.s32.totalorder %s69, %s72
      %p78 = scmp.eq.s32.totalorder %s17, 0
      %p79 = por %p77, %p78
      %p80 = scmp.ne.s32.totalorder %s69, %s72
      %p81 = scmp.eq.s32.totalorder %s22, 1
      %p82 = por %p80, %p81
      %p83 = scmp.ne.s32.totalorder %s72, %s73
      %p84 = scmp.eq.s32.totalorder %s22, 0
      %p85 = por %p83, %p84
      %p86 = scmp.ne.s32.totalorder %s72, %s73
      %p87 = scmp.eq.s32.totalorder %s23, 1
      %p88 = por %p86, %p87
      %p90 = scmp.ne.s32.totalorder %s73, %s89
      %p91 = scmp.eq.s32.totalorder %s23, 0
      %p92 = por %p90, %p91
      %s93 = ssub.s32 %s24, %s36
      %s94 = ssub.s32 %s25, %s32
      %s95 = sor.u32 %s93, %s94
      %p96 = scmp.eq.s32.totalorder %s95, 0
      %s98 = sadd.s32 %s97, 1
      %s99 = scalar_select %p96, %s97, %s98
      %p102 = pneg %p96
      %p103 = scmp.eq.s32.totalorder %s17, 1
      %p104 = por %p102, %p103
      %p105 = scmp.ne.s32.totalorder %s97, %s100
      %p106 = scmp.eq.s32.totalorder %s17, 0
      %p107 = por %p105, %p106
      %p108 = scmp.ne.s32.totalorder %s97, %s100
      %p109 = scmp.eq.s32.totalorder %s22, 1
      %p110 = por %p108, %p109
      %p111 = scmp.ne.s32.totalorder %s100, %s101
      %p112 = scmp.eq.s32.totalorder %s22, 0
      %p113 = por %p111, %p112
      %p114 = scmp.ne.s32.totalorder %s100, %s101
      %p115 = scmp.eq.s32.totalorder %s23, 1
      %p116 = por %p114, %p115
      %p118 = scmp.ne.s32.totalorder %s101, %s117
      %p119 = scmp.eq.s32.totalorder %s23, 0
      %p120 = por %p118, %p119
      %p121 = scmp.le.s32.totalorder 1, %s17
      %p122 = scmp.lt.s32.totalorder %s17, 3
      %p123 = pnand %p121, %p122
      %p124 = pneg %p123
      // Predicated region
      $region9: #{tpu_custom_call.1} parent=5 // pred_check
        _
      $region10: #{tpu_custom_call.1} parent=5 // pred_check_branch
        %126 = sbr.rel (%p123) target = $region12
      $region11: #{tpu_custom_call.1} parent=5 // pred_region
        %s127 = ssub.s32 %s17, 1
      $region12: #{tpu_custom_call.1} parent=5 // pred_fallthru
        _
      %p128 = scmp.lt.s32.totalorder %s17, 2
      // Predicated region
      $region13: #{tpu_custom_call.1} parent=5 // pred_check
        %p129 = pneg %p128
      $region14: #{tpu_custom_call.1} parent=5 // pred_check_branch
        %131 = sbr.rel (%p129) target = $region16
      $region15: #{tpu_custom_call.1} parent=5 // pred_region
        // Predicated region
        $region17: #{tpu_custom_call.1} parent=15 // pred_check
          %p132 = pneg %p51
        $region18: #{tpu_custom_call.1} parent=15 // pred_check_branch
          %134 = sbr.rel (%p132) target = $region20
        $region19: #{tpu_custom_call.1} parent=15 // pred_region
          %s135 = sand.u32 %s41, 1
          %s136 = scalar_lea.sflag [#allocation3], %s135
          %s137 = sand.u32 %s41, 1
          %s138 = smul.addr %s137, 8
          %s139 = scalar_lea.vmem [#allocation2], %s138
          %141 = vsyncadd %s136, 0
          %s142 = smul.addr %s24, 4
          %s143 = sadd.s32 %s25, %s142
          %s144 = smul.addr %s143, 2
          %s145 = scalar_lea.hbm %s0, %s144
          %s146 = sshll.u32 %s145, 4
          %s147 = int_to_ptr.hbm [resolvable:$true] %s146
          %s148 = sshll.u32 %s139, 4
          %s149 = int_to_ptr.vmem [resolvable:$true] %s148
          %154 = dma.hbm_to_vmem [thread:$0]  %s147, 128, %s149, %s136, 32, 32, 2
        $region20: #{tpu_custom_call.1} parent=15 // pred_fallthru
          _
        // Predicated region
        $region21: #{tpu_custom_call.1} parent=15 // pred_check
          %p155 = pneg %p79
        $region22: #{tpu_custom_call.1} parent=15 // pred_check_branch
          %157 = sbr.rel (%p155) target = $region24
        $region23: #{tpu_custom_call.1} parent=15 // pred_region
          %s158 = sand.u32 %s69, 1
          %s159 = scalar_lea.sflag [#allocation6], %s158
          %s160 = sand.u32 %s69, 1
          %s161 = smul.addr %s160, 2
          %s162 = scalar_lea.vmem [#allocation5], %s161
          %164 = vsyncadd %s159, 0
          %s165 = sadd.s32 %s25, %s24
          %s166 = smul.addr %s165, 2
          %s167 = scalar_lea.hbm %s1, %s166
          %s169 = sshll.u32 %s167, 4
          %s170 = int_to_ptr.hbm [resolvable:$true] %s169
          %s171 = sshll.u32 %s162, 4
          %s172 = int_to_ptr.vmem [resolvable:$true] %s171
          %174 = dma.hbm_to_vmem [thread:$0]  %s170, 32, %s172, %s159
        $region24: #{tpu_custom_call.1} parent=15 // pred_fallthru
          _
      $region16: #{tpu_custom_call.1} parent=5 // pred_fallthru
        _
      %p175 = scmp.le.s32.totalorder 1, %s17
      %p176 = scmp.lt.s32.totalorder %s17, 3
      %p177 = pnand %p175, %p176
      %p178 = pneg %p177
      // Predicated region
      $region25: #{tpu_custom_call.1} parent=5 // pred_check
        _
      $region26: #{tpu_custom_call.1} parent=5 // pred_check_branch
        %180 = sbr.rel (%p177) target = $region28
      $region27: #{tpu_custom_call.1} parent=5 // pred_region
        %s181 = ssub.s32 %s17, 1
        %s182 = sand.u32 %s44, 1
        %s183 = scalar_lea.sflag [#allocation3], %s182
        %s184 = sand.u32 %s44, 1
        %s185 = smul.addr %s184, 8
        %s186 = scalar_lea.vmem [#allocation2], %s185
        // Predicated region
        $region29: #{tpu_custom_call.1} parent=27 // pred_check
          %p187 = pneg %p57
        $region30: #{tpu_custom_call.1} parent=27 // pred_check_branch
          %189 = sbr.rel (%p187) target = $region32
        $region31: #{tpu_custom_call.1} parent=27 // pred_region
          %191 = dma.done %s183, 128
        $region32: #{tpu_custom_call.1} parent=27 // pred_fallthru
          _
        %s192 = sand.u32 %s72, 1
        %s193 = scalar_lea.sflag [#allocation6], %s192
        %s194 = sand.u32 %s72, 1
        %s195 = smul.addr %s194, 2
        %s196 = scalar_lea.vmem [#allocation5], %s195
        // Predicated region
        $region33: #{tpu_custom_call.1} parent=27 // pred_check
          %p197 = pneg %p85
        $region34: #{tpu_custom_call.1} parent=27 // pred_check_branch
          %199 = sbr.rel (%p197) target = $region36
        $region35: #{tpu_custom_call.1} parent=27 // pred_region
          %201 = dma.done %s193, 32
        $region36: #{tpu_custom_call.1} parent=27 // pred_fallthru
          _
        %s202 = sand.u32 %s44, 1
        %s203 = scalar_lea.sflag [#allocation3], %s202
        %s204 = sand.u32 %s44, 1
        %s205 = smul.addr %s204, 8
        %s206 = scalar_lea.vmem [#allocation2], %s205
        %p207 = pneg %p57
        %p208 = pneg %p54
        %s209 = sand.u32 %s72, 1
        %s210 = scalar_lea.sflag [#allocation6], %s209
        %s211 = sand.u32 %s72, 1
        %s212 = smul.addr %s211, 2
        %s213 = scalar_lea.vmem [#allocation5], %s212
        %p214 = pneg %p85
        %p215 = pneg %p82
        %p216 = pneg %p113
        %p217 = pneg %p110
        %s218 = sand.u32 %s100, 1
        %s219 = scalar_lea.sflag [#allocation4], %s218
        %s220 = sand.u32 %s100, 1
        %s221 = scalar_lea.vmem [#allocation7], %s220
        %v222 = vld [vmem:[%s186] sm:$0x3]
        %v223 = vld [vmem:[%s186 + $0x2] sm:$0x3]
        %v224 = vld [vmem:[%s186 + $0x4] sm:$0x3]
        %v225 = vld [vmem:[%s186 + $0x6] sm:$0x3]
        %v226 = vld [vmem:[%s196] sm:$0x3]
        %v227 = vxor.u32 %v222, 2147483648
        %v228 = vxor.u32 %v223, 2147483648
        %v229 = vxor.u32 %v224, 2147483648
        %v230 = vxor.u32 %v225, 2147483648
        %v231 = vmul.f32 %v227, 1.442695
        %v232 = vpow.pop %v231
        %v233 = vmul.f32 %v228, 1.442695
        %v234 = vpow.pop %v233
        %v235 = vmul.f32 %v229, 1.442695
        %v236 = vpow.pop %v235
        %v237 = vmul.f32 %v230, 1.442695
        %v238 = vpow.pop %v237
        %v239 = vadd.f32 %v232, 1.0
        %v240 = vadd.f32 %v234, 1.0
        %v241 = vadd.f32 %v236, 1.0
        %v242 = vadd.f32 %v238, 1.0
        %v243 = vrcp.pop %v239
        %v244 = vmul.f32 %v239, %v243
        %v245 = vsub.f32 1.0, %v244
        %v246 = vmul.f32 %v243, %v245
        %v247 = vadd.f32 %v243, %v246
        %vm248 = vweird.f32 %v239
        %vm249 = vweird.f32 %v243
        %vm250 = vmor %vm248, %vm249
        %v251 = vsel %vm250, %v243, %v247
        %v252 = vand.u32 2147483647, %v239
        %vm253 = vcmp.eq.f32.partialorder %v252, 8.507059e+37
        %v254 = vand.u32 %v239, 2147483648
        %v255 = vor.u32 1.1754944e-38, %v254
        %v256 = vsel %vm253, %v255, %v251
        %v257 = vmul.f32 1.0, %v256
        %v258 = vrcp.pop %v240
        %v259 = vmul.f32 %v240, %v258
        %v260 = vsub.f32 1.0, %v259
        %v261 = vmul.f32 %v258, %v260
        %v262 = vadd.f32 %v258, %v261
        %vm263 = vweird.f32 %v240
        %vm264 = vweird.f32 %v258
        %vm265 = vmor %vm263, %vm264
        %v266 = vsel %vm265, %v258, %v262
        %v267 = vand.u32 2147483647, %v240
        %vm268 = vcmp.eq.f32.partialorder %v267, 8.507059e+37
        %v269 = vand.u32 %v240, 2147483648
        %v270 = vor.u32 1.1754944e-38, %v269
        %v271 = vsel %vm268, %v270, %v266
        %v272 = vmul.f32 1.0, %v271
        %v273 = vrcp.pop %v241
        %v274 = vmul.f32 %v241, %v273
        %v275 = vsub.f32 1.0, %v274
        %v276 = vmul.f32 %v273, %v275
        %v277 = vadd.f32 %v273, %v276
        %vm278 = vweird.f32 %v241
        %vm279 = vweird.f32 %v273
        %vm280 = vmor %vm278, %vm279
        %v281 = vsel %vm280, %v273, %v277
        %v282 = vand.u32 2147483647, %v241
        %vm283 = vcmp.eq.f32.partialorder %v282, 8.507059e+37
        %v284 = vand.u32 %v241, 2147483648
        %v285 = vor.u32 1.1754944e-38, %v284
        %v286 = vsel %vm283, %v285, %v281
        %v287 = vmul.f32 1.0, %v286
        %v288 = vrcp.pop %v242
        %v289 = vmul.f32 %v242, %v288
        %v290 = vsub.f32 1.0, %v289
        %v291 = vmul.f32 %v288, %v290
        %v292 = vadd.f32 %v288, %v291
        %vm293 = vweird.f32 %v242
        %vm294 = vweird.f32 %v288
        %vm295 = vmor %vm293, %vm294
        %v296 = vsel %vm295, %v288, %v292
        %v297 = vand.u32 2147483647, %v242
        %vm298 = vcmp.eq.f32.partialorder %v297, 8.507059e+37
        %v299 = vand.u32 %v242, 2147483648
        %v300 = vor.u32 1.1754944e-38, %v299
        %v301 = vsel %vm298, %v300, %v296
        %v302 = vmul.f32 1.0, %v301
        %vm303 = vcmp.gt.f32.partialorder %v226, 0.0
        %v304 = vsub.f32 %v226, %v257
        %v305 = vsub.f32 %v226, %v272
        %v306 = vsub.f32 %v226, %v287
        %v307 = vsub.f32 %v226, %v302
        %v308 = vsel %vm303, 1, 0
        %vm309 = vcmp.eq.s32.totalorder %v308, 1
        %v310 = vsel %vm309, %v304, %v257
        %v311 = vsel %vm309, %v305, %v272
        %v312 = vsel %vm309, %v306, %v287
        %v313 = vsel %vm309, %v307, %v302
        %v314 = vsub.f32 1.0, %v257
        %v315 = vsub.f32 1.0, %v272
        %v316 = vsub.f32 1.0, %v287
        %v317 = vsub.f32 1.0, %v302
        %v318 = vsel %vm309, %v257, %v314
        %v319 = vsel %vm309, %v272, %v315
        %v320 = vsel %vm309, %v287, %v316
        %v321 = vsel %vm309, %v302, %v317
        %v322 = vsel %vm303, 0.3, 0.7
        %v323 = vrsqrt.pop %v310
        %v324 = vmul.f32 %v323, %v310
        %v325 = vmul.f32 %v324, %v323
        %v326 = vmul.f32 0.5, %v325
        %v327 = vsub.f32 1.5, %v326
        %v328 = vmul.f32 %v323, %v327
        %v329 = vmul.f32 %v310, %v328
        %vm330 = vcmp.eq.f32.partialorder %v310, inf
        %v331 = vsel %vm330, %v310, %v329
        %vm332 = vcmp.eq.f32.partialorder %v310, 0.0
        %v333 = vand.u32 %v310, 2147483648
        %v334 = vsel %vm332, %v333, %v331
        %v335 = vrsqrt.pop %v311
        %v336 = vmul.f32 %v335, %v311
        %v337 = vmul.f32 %v336, %v335
        %v338 = vmul.f32 0.5, %v337
        %v339 = vsub.f32 1.5, %v338
        %v340 = vmul.f32 %v335, %v339
        %v341 = vmul.f32 %v311, %v340
        %vm342 = vcmp.eq.f32.partialorder %v311, inf
        %v343 = vsel %vm342, %v311, %v341
        %vm344 = vcmp.eq.f32.partialorder %v311, 0.0
        %v345 = vand.u32 %v311, 2147483648
        %v346 = vsel %vm344, %v345, %v343
        %v347 = vrsqrt.pop %v312
        %v348 = vmul.f32 %v347, %v312
        %v349 = vmul.f32 %v348, %v347
        %v350 = vmul.f32 0.5, %v349
        %v351 = vsub.f32 1.5, %v350
        %v352 = vmul.f32 %v347, %v351
        %v353 = vmul.f32 %v312, %v352
        %vm354 = vcmp.eq.f32.partialorder %v312, inf
        %v355 = vsel %vm354, %v312, %v353
        %vm356 = vcmp.eq.f32.partialorder %v312, 0.0
        %v357 = vand.u32 %v312, 2147483648
        %v358 = vsel %vm356, %v357, %v355
        %v359 = vrsqrt.pop %v313
        %v360 = vmul.f32 %v359, %v313
        %v361 = vmul.f32 %v360, %v359
        %v362 = vmul.f32 0.5, %v361
        %v363 = vsub.f32 1.5, %v362
        %v364 = vmul.f32 %v359, %v363
        %v365 = vmul.f32 %v313, %v364
        %vm366 = vcmp.eq.f32.partialorder %v313, inf
        %v367 = vsel %vm366, %v313, %v365
        %vm368 = vcmp.eq.f32.partialorder %v313, 0.0
        %v369 = vand.u32 %v313, 2147483648
        %v370 = vsel %vm368, %v369, %v367
        %v371 = vmul.f32 %v310, %v334
        %v372 = vmul.f32 %v311, %v346
        %v373 = vmul.f32 %v312, %v358
        %v374 = vmul.f32 %v313, %v370
        %v375 = vrsqrt.pop %v371
        %v376 = vmul.f32 %v375, %v371
        %v377 = vmul.f32 %v376, %v375
        %v378 = vmul.f32 0.5, %v377
        %v379 = vsub.f32 1.5, %v378
        %v380 = vmul.f32 %v375, %v379
        %v381 = vmul.f32 %v371, %v380
        %vm382 = vcmp.eq.f32.partialorder %v371, inf
        %v383 = vsel %vm382, %v371, %v381
        %vm384 = vcmp.eq.f32.partialorder %v371, 0.0
        %v385 = vand.u32 %v371, 2147483648
        %v386 = vsel %vm384, %v385, %v383
        %v387 = vrsqrt.pop %v372
        %v388 = vmul.f32 %v387, %v372
        %v389 = vmul.f32 %v388, %v387
        %v390 = vmul.f32 0.5, %v389
        %v391 = vsub.f32 1.5, %v390
        %v392 = vmul.f32 %v387, %v391
        %v393 = vmul.f32 %v372, %v392
        %vm394 = vcmp.eq.f32.partialorder %v372, inf
        %v395 = vsel %vm394, %v372, %v393
        %vm396 = vcmp.eq.f32.partialorder %v372, 0.0
        %v397 = vand.u32 %v372, 2147483648
        %v398 = vsel %vm396, %v397, %v395
        %v399 = vrsqrt.pop %v373
        %v400 = vmul.f32 %v399, %v373
        %v401 = vmul.f32 %v400, %v399
        %v402 = vmul.f32 0.5, %v401
        %v403 = vsub.f32 1.5, %v402
        %v404 = vmul.f32 %v399, %v403
        %v405 = vmul.f32 %v373, %v404
        %vm406 = vcmp.eq.f32.partialorder %v373, inf
        %v407 = vsel %vm406, %v373, %v405
        %vm408 = vcmp.eq.f32.partialorder %v373, 0.0
        %v409 = vand.u32 %v373, 2147483648
        %v410 = vsel %vm408, %v409, %v407
        %v411 = vrsqrt.pop %v374
        %v412 = vmul.f32 %v411, %v374
        %v413 = vmul.f32 %v412, %v411
        %v414 = vmul.f32 0.5, %v413
        %v415 = vsub.f32 1.5, %v414
        %v416 = vmul.f32 %v411, %v415
        %v417 = vmul.f32 %v374, %v416
        %vm418 = vcmp.eq.f32.partialorder %v374, inf
        %v419 = vsel %vm418, %v374, %v417
        %vm420 = vcmp.eq.f32.partialorder %v374, 0.0
        %v421 = vand.u32 %v374, 2147483648
        %v422 = vsel %vm420, %v421, %v419
        %v423 = vsub.f32 0.0, %v322
        %v424 = vmul.f32 %v423, %v386
        %v425 = vmul.f32 %v423, %v398
        %v426 = vmul.f32 %v423, %v410
        %v427 = vmul.f32 %v423, %v422
        %v428 = vmax.f32 %v318, 1e-08
        %v429 = vmax.f32 %v319, 1e-08
        %v430 = vmax.f32 %v320, 1e-08
        %v431 = vmax.f32 %v321, 1e-08
        %v432 = vmin.f32 %v428, 1.0
        %v433 = vmin.f32 %v429, 1.0
        %v434 = vmin.f32 %v430, 1.0
        %v435 = vmin.f32 %v431, 1.0
        %v436 = vlog2.pop %v432
        %v437 = vmul.f32 %v436, 0.6931472
        %v438 = vlog2.pop %v433
        %v439 = vmul.f32 %v438, 0.6931472
        %v440 = vlog2.pop %v434
        %v441 = vmul.f32 %v440, 0.6931472
        %v442 = vlog2.pop %v435
        %v443 = vmul.f32 %v442, 0.6931472
        %v444 = vmul.f32 %v424, %v437
        %v445 = vmul.f32 %v425, %v439
        %v446 = vmul.f32 %v426, %v441
        %v447 = vmul.f32 %v427, %v443
        %vm448 = vcmask 1041408
        %v449 = vsel %vm448, %v444, 0.0
        %v450 = vsel %vm448, %v445, 0.0
        %v451 = vadd.f32 %v449, %v450
        %v452 = vsel %vm448, %v446, 0.0
        %v453 = vadd.f32 %v451, %v452
        %v454 = vsel %vm448, %v447, 0.0
        %v455 = vadd.f32 %v453, %v454
        %v456 = vsel %vm448, %v455, 0.0
        %v457 = vrot.slane %v456, 4
        %v458 = vadd.f32 %v456, %v457
        %v459 = vrot.slane %v458, 2
        %v460 = vadd.f32 %v458, %v459
        %v461 = vrot.slane %v460, 1
        %v462 = vadd.f32 %v460, %v461
        %463 = vst [vmem:[%s221] sm:$0x1] %v462
        %s464 = sand.u32 %s100, 1
        %s465 = scalar_lea.sflag [#allocation4], %s464
        %s466 = sand.u32 %s100, 1
        %s467 = scalar_lea.vmem [#allocation7], %s466
        // Predicated region
        $region37: #{tpu_custom_call.1} parent=27 // pred_check
          %p468 = pneg %p110
        $region38: #{tpu_custom_call.1} parent=27 // pred_check_branch
          %470 = sbr.rel (%p468) target = $region40
        $region39: #{tpu_custom_call.1} parent=27 // pred_region
          %472 = vsyncadd %s465, 0
          %s473 = sadd.s32 %s27, %s26
          %s474 = scalar_lea.hbm %s2, %s473
          %s476 = sshll.u32 %s467, 4
          %s477 = int_to_ptr.vmem [resolvable:$true] %s476
          %s478 = sshll.u32 %s474, 4
          %s479 = int_to_ptr.hbm [resolvable:$true] %s478
          %481 = dma.vmem_to_hbm [thread:$0]  %s477, 16, %s479, %s465
        $region40: #{tpu_custom_call.1} parent=27 // pred_fallthru
          _
      $region28: #{tpu_custom_call.1} parent=5 // pred_fallthru
        _
      %p482 = scmp.le.s32.totalorder 2, %s17
      // Predicated region
      $region41: #{tpu_custom_call.1} parent=5 // pred_check
        %p483 = pneg %p482
      $region42: #{tpu_custom_call.1} parent=5 // pred_check_branch
        %485 = sbr.rel (%p483) target = $region44
      $region43: #{tpu_custom_call.1} parent=5 // pred_region
        %s486 = ssub.s32 %s17, 2
        // Predicated region
        $region45: #{tpu_custom_call.1} parent=43 // pred_check
          %p487 = pneg %p116
        $region46: #{tpu_custom_call.1} parent=43 // pred_check_branch
          %489 = sbr.rel (%p487) target = $region48
        $region47: #{tpu_custom_call.1} parent=43 // pred_region
          %s490 = sand.u32 %s101, 1
          %s491 = scalar_lea.sflag [#allocation4], %s490
          %s492 = sand.u32 %s101, 1
          %s493 = scalar_lea.vmem [#allocation7], %s492
          %495 = dma.done %s491, 16
        $region48: #{tpu_custom_call.1} parent=43 // pred_fallthru
          _
      $region44: #{tpu_custom_call.1} parent=5 // pred_fallthru
        _
    $region6: #{tpu_custom_call.1} parent=1 // loop_footer
      %s21 = sadd.s32 1, %s17
    $region7: #{tpu_custom_call.1} parent=1 // loop_footer_branch
      %16 = sbr.rel target = $region3
    $region8: #{tpu_custom_call.1} parent=1 // loop_exit
      _
    %496 = vsyncpa [#allocation3], 1
    %s497 = scalar_lea.sflag [#allocation3], 1
    %498 = vsyncpa %s497, 1
    %499 = vsyncpa [#allocation6], 1
    %s500 = scalar_lea.sflag [#allocation6], 1
    %501 = vsyncpa %s500, 1
    %502 = vsyncpa [#allocation4], 1
    %s503 = scalar_lea.sflag [#allocation4], 1
    %504 = vsyncpa %s503, 1

</llo_original>
